<compile_context>
chip_gen: v7x
topology: tpu7x:2x2x1
jax: 0.10.0
libtpu: 0.0.40
codegen_flags: <defaults>
</compile_context>

<pallas_src>
import functools
import math

import jax
import jax.numpy as jnp
from jax.experimental import pallas as pl
from jax.experimental.pallas import tpu as pltpu

_MIB = 1024 * 1024


def _round_up(v, m):
    return ((v + m - 1) // m) * m


def _leaky_relu_f32(v, negative_slope):
    # For 0 < slope < 1, max(v, slope*v) == leaky_relu(v): mul + max (2 VPU
    # ops) instead of compare + mul + select (3 ops). Fallback otherwise.
    if 0.0 < negative_slope < 1.0:
        return jnp.maximum(v, negative_slope * v)
    return jnp.where(v >= 0.0, v, negative_slope * v)


def _physical_vmem_bytes():
    """Best-effort physical VMEM per TensorCore (v5e/v6e 128 MiB, v7x 64 MiB)."""
    try:
        info = pltpu.get_tpu_info()
        for attr in ("vmem_capacity_bytes", "vmem_size_bytes", "vmem_bytes"):
            v = getattr(info, attr, None)
            if v:
                return int(v)
    except Exception:
        pass
    return 64 * _MIB  # conservative default (v7x per-TC size)


def _simple_linear_kernel(x_ref, w1t_ref, w2t_ref, o_ref, *, negative_slope):
    # x_ref:   (tile_m, input_size)   already in the weight/compute dtype
    # w1t_ref: (input_size, hidden_p) resident across the row grid
    # w2t_ref: (hidden_p, output_p)   resident across the row grid
    # o_ref:   (tile_m, output_p)     lane-dense (output_p % 128 == 0)
    w1t = w1t_ref[...]
    w2t = w2t_ref[...]
    x = x_ref[...]
    if x.dtype != w1t.dtype:  # defensive; wrapper casts x outside the kernel
        x = x.astype(w1t.dtype)

    # Layer 1: MXU matmul, f32 accumulation; LeakyReLU on the VPU in f32.
    h = jnp.dot(x, w1t, preferred_element_type=jnp.float32)
    h = _leaky_relu_f32(h, negative_slope)

    # Layer 2: feed the MXU in the weight dtype (intentional downcast of the
    # layer-1 activations when running mixed precision), accumulate in f32.
    y = jnp.dot(h.astype(w2t.dtype), w2t, preferred_element_type=jnp.float32)
    y = _leaky_relu_f32(y, negative_slope)

    o_ref[...] = y.astype(o_ref.dtype)


def prepare_weights(w1, w2, compute_dtype=None):
    """One-time weight prep (parameter-load time, not per call).

    w1: [hidden, input]  (PyTorch lin1.weight layout)
    w2: [output, hidden] (PyTorch lin2.weight layout)
    Returns (w1t, w2t, output_size) with
      w1t: [input, hidden_p], w2t: [hidden_p, output_p],
      hidden_p/output_p zero-padded to multiples of 128 (lane-dense).
    compute_dtype=jnp.bfloat16 is valid on v5e/v6e/v7x (all MXUs do bf16).
    """
    hidden_dim, input_size = w1.shape
    output_size, hidden_dim2 = w2.shape
    assert hidden_dim == hidden_dim2
    dt = compute_dtype if compute_dtype is not None else w1.dtype

    hidden_p = _round_up(hidden_dim, 128)
    output_p = _round_up(output_size, 128)

    w1t = jnp.zeros((input_size, hidden_p), dt)
    w1t = w1t.at[:, :hidden_dim].set(w1.T.astype(dt))
    w2t = jnp.zeros((hidden_p, output_p), dt)
    w2t = w2t.at[:hidden_dim, :output_size].set(w2.T.astype(dt))
    return w1t, w2t, output_size


def simple_linear_forward(x, w1t, w2t, output_size, negative_slope=0.2,
                          tile_m=1024, return_padded=False):
    """x: [N, input_size]; w1t/w2t from prepare_weights()."""
    n, input_size = x.shape
    assert w1t.shape[0] == input_size
    hidden_p = w1t.shape[1]
    output_p = w2t.shape[1]
    assert w2t.shape[0] == hidden_p

    out_dtype = x.dtype
    # Cast x to the weight/compute dtype OUTSIDE the kernel: with bf16 weights
    # this halves x HBM traffic and the x double-buffer VMEM.
    if x.dtype != w1t.dtype:
        x = x.astype(w1t.dtype)

    bpe_x = x.dtype.itemsize
    bpe_w = w1t.dtype.itemsize
    bpe_o = jnp.dtype(out_dtype).itemsize

    phys_vmem = _physical_vmem_bytes()
    # Tile-selection budget: ~60% of physical VMEM
    # (v5e/v6e ~77 MiB, v7x ~38 MiB), capped at 96 MiB.
    budget = min(int(phys_vmem * 0.6), 96 * _MIB)

    def vmem_bytes(t):
        # Pallas double-buffers EVERY input by default, so the resident
        # weights count 2x even though their index_map is constant.
        return (2 * t * input_size * bpe_x            # x tiles (double-buffered)
                + 2 * input_size * hidden_p * bpe_w   # w1t (double-buffered)
                + 2 * hidden_p * output_p * bpe_w     # w2t (double-buffered)
                + 2 * t * output_p * bpe_o            # out tiles (double-buffered)
                + t * hidden_p * 4 + t * output_p * 4)  # f32 temporaries

    if vmem_bytes(8) > budget:
        # Weight pair can't stay resident in VMEM (can happen on v7x's 64 MiB
        # even when it fits v5e/v6e's 128 MiB). Plain-XLA fallback.
        # TODO(synk): hidden/K-tiled Pallas variant with an accumulator scratch
        # and an "arbitrary" reduction axis for weights too large for VMEM.
        h = _leaky_relu_f32(
            jnp.dot(x, w1t, preferred_element_type=jnp.float32), negative_slope)
        y = _leaky_relu_f32(
            jnp.dot(h.astype(w2t.dtype), w2t, preferred_element_type=jnp.float32),
            negative_slope)
        y = y.astype(out_dtype)
        if return_padded or output_p == output_size:
            return y
        return y[:, :output_size]

    # Row tile: multiple of 8, no larger than (padded) N so tiny problems
    # don't burn MXU cycles on padding.
    tm = max(8, min(int(tile_m), _round_up(n, 8)))
    tm = _round_up(tm, 8)
    # Keep >= 2 row tiles for moderate/large N so the "parallel" axis can
    # split across both TensorCores on v7x (one extra ~0.35 us grid step on
    # single-TC chips is negligible).
    if n >= 256:
        tm = min(tm, _round_up(pl.cdiv(n, 2), 8))
    # Clamp tm into the VMEM budget.
    while tm > 8 and vmem_bytes(tm) > budget:
        tm = _round_up(max(8, tm // 2), 8)

    grid_m = pl.cdiv(n, tm)

    # Explicit scoped-VMEM limit: what this plan needs plus headroom. Never
    # rely on the default (only 16 MiB on v5e, 32 MiB on v6e/v7x).
    vmem_limit = min(max(32 * _MIB, vmem_bytes(tm) + 4 * _MIB),
                     int(phys_vmem * 0.9))

    flops = 2 * n * (input_size * hidden_p + hidden_p * output_p)
    bytes_accessed = (n * input_size * bpe_x
                      + w1t.size * bpe_w + w2t.size * bpe_w
                      + n * output_p * bpe_o)

    kernel = functools.partial(_simple_linear_kernel,
                               negative_slope=negative_slope)

    out = pl.pallas_call(
        kernel,
        out_shape=jax.ShapeDtypeStruct((n, output_p), out_dtype),
        grid_spec=pl.GridSpec(
            grid=(grid_m,),
            in_specs=[
                # x streamed by row tile (ragged last tile handled by Pallas).
                pl.BlockSpec((tm, input_size), lambda i: (i, 0)),
                # Weights fully resident across the row grid.
                pl.BlockSpec((input_size, hidden_p), lambda i: (0, 0)),
                pl.BlockSpec((hidden_p, output_p), lambda i: (0, 0)),
            ],
            out_specs=pl.BlockSpec((tm, output_p), lambda i: (i, 0)),
        ),
        compiler_params=pltpu.CompilerParams(
            dimension_semantics=("parallel",),
            vmem_limit_bytes=int(vmem_limit)),
        cost_estimate=pl.CostEstimate(flops=flops, transcendentals=0,
                                      bytes_accessed=bytes_accessed),
    )(x, w1t, w2t)

    if return_padded or output_p == output_size:
        # No post-kernel slice copy: either no lane padding, or the caller
        # accepts the padded [N, output_p] slab and fuses the slice downstream.
        return out
    return out[:, :output_size]


def xavier_uniform(key, shape, gain):
    # shape = (fan_out, fan_in) as in torch.nn.Linear.weight
    fan_out, fan_in = shape
    bound = gain * math.sqrt(6.0 / (fan_in + fan_out))
    return jax.random.uniform(key, shape, jnp.float32, -bound, bound)


if __name__ == "__main__":
    # Small shapes consistent with the module's forward: [num_nodes, in_channels].
    num_nodes = 64
    input_size = 32
    hidden_dim = 64
    output_size = 16
    negative_slope = 0.2

    key = jax.random.PRNGKey(0)
    kx, k1, k2, kx2 = jax.random.split(key, 4)

    gain = math.sqrt(2.0 / (1.0 + negative_slope ** 2))  # calculate_gain('leaky_relu', 0.2)
    x = jax.random.normal(kx, (num_nodes, input_size), jnp.float32)
    w1 = xavier_uniform(k1, (hidden_dim, input_size), gain)   # lin1.weight
    w2 = xavier_uniform(k2, (output_size, hidden_dim), gain)  # lin2.weight

    # Reference in plain JAX.
    def lrelu(v):
        return jnp.where(v >= 0, v, negative_slope * v)
    y_ref = lrelu(lrelu(x @ w1.T) @ w2.T)

    # --- f32 path ---
    w1t, w2t, out_sz = prepare_weights(w1, w2)          # one-time prep
    y = simple_linear_forward(x, w1t, w2t, out_sz, negative_slope)
    jax.block_until_ready(y)
    assert y.shape == (num_nodes, output_size)
    assert jnp.allclose(y, y_ref, atol=2e-5, rtol=2e-5), "f32 mismatch"

    # --- multi-tile path: ragged last tile + >=2 grid steps (v7x 2-TC split) ---
    x2 = jax.random.normal(kx2, (300, input_size), jnp.float32)
    y2_ref = lrelu(lrelu(x2 @ w1.T) @ w2.T)
    y2 = simple_linear_forward(x2, w1t, w2t, out_sz, negative_slope)
    jax.block_until_ready(y2)
    assert y2.shape == (300, output_size)
    assert jnp.allclose(y2, y2_ref, atol=2e-5, rtol=2e-5), "multi-tile mismatch"

    # --- bf16 mixed-precision weights (valid on v5e/v6e/v7x: all MXUs do bf16;
    #     activations/accumulators stay f32; x is cast once in the wrapper).
    #     Note: layer-1 activations are intentionally downcast to bf16 before
    #     the second matmul — a documented numerics choice vs the f32 reference.
    w1t_bf, w2t_bf, _ = prepare_weights(w1, w2, compute_dtype=jnp.bfloat16)
    y_bf = simple_linear_forward(x, w1t_bf, w2t_bf, out_sz, negative_slope)
    jax.block_until_ready(y_bf)
    assert y_bf.shape == (num_nodes, output_size)
    assert jnp.allclose(y_bf.astype(jnp.float32), y_ref, atol=0.1, rtol=0.1), "bf16 mismatch"

    print("KERNEL_OK")
</pallas_src>

<mosaic_0001>
module attributes {stable_mosaic.version = 11 : i64} {
  func.func @_simple_linear_kernel(%arg0: i32, %arg1: memref<64x32xf32, #tpu.memory_space<vmem>>, %arg2: memref<32x128xf32, #tpu.memory_space<vmem>>, %arg3: memref<128x128xf32, #tpu.memory_space<vmem>>, %arg4: memref<64x128xf32, #tpu.memory_space<vmem>>) attributes {dimension_semantics = [#tpu.dimension_semantics<parallel>], iteration_bounds = array<i64: 1>, scalar_prefetch = 0 : i64, scratch_operands = 0 : i64, tpu.core_type = #tpu.core_type<tc>, window_params = [{transform_indices = @transform_0, window_bounds = array<i64: 64, 32>}, {pipeline_mode = #tpu.pipeline_mode<synchronous>, transform_indices = @transform_1, window_bounds = array<i64: 32, 128>}, {pipeline_mode = #tpu.pipeline_mode<synchronous>, transform_indices = @transform_2, window_bounds = array<i64: 128, 128>}, {transform_indices = @transform_3, window_bounds = array<i64: 64, 128>}]} {
    %c0 = arith.constant 0 : index
    %c0_0 = arith.constant 0 : index
    %0 = vector.load %arg2[%c0, %c0_0] : memref<32x128xf32, #tpu.memory_space<vmem>>, vector<32x128xf32>
    %c0_1 = arith.constant 0 : index
    %c0_2 = arith.constant 0 : index
    %1 = vector.load %arg3[%c0_1, %c0_2] : memref<128x128xf32, #tpu.memory_space<vmem>>, vector<128x128xf32>
    %c0_3 = arith.constant 0 : index
    %c0_4 = arith.constant 0 : index
    %2 = vector.load %arg1[%c0_3, %c0_4] : memref<64x32xf32, #tpu.memory_space<vmem>>, vector<64x32xf32>
    %cst = arith.constant dense<0.000000e+00> : vector<64x128xf32>
    %3 = tpu.matmul %2, %0, %cst {dimension_numbers = #tpu.dot_dimension_numbers<[1], [0], [0], [1], [0, 0, 1, 1], [], []>} : vector<64x32xf32>, vector<32x128xf32>, vector<64x128xf32> -> vector<64x128xf32>
    %cst_5 = arith.constant 2.000000e-01 : f32
    %4 = vector.broadcast %cst_5 : f32 to vector<64x128xf32>
    %5 = arith.mulf %4, %3 : vector<64x128xf32>
    %6 = arith.maximumf %3, %5 : vector<64x128xf32>
    %cst_6 = arith.constant dense<0.000000e+00> : vector<64x128xf32>
    %7 = tpu.matmul %6, %1, %cst_6 {dimension_numbers = #tpu.dot_dimension_numbers<[1], [0], [0], [1], [0, 0, 1, 1], [], []>} : vector<64x128xf32>, vector<128x128xf32>, vector<64x128xf32> -> vector<64x128xf32>
    %cst_7 = arith.constant 2.000000e-01 : f32
    %8 = vector.broadcast %cst_7 : f32 to vector<64x128xf32>
    %9 = arith.mulf %8, %7 : vector<64x128xf32>
    %10 = arith.maximumf %7, %9 : vector<64x128xf32>
    %c0_8 = arith.constant 0 : index
    %c0_9 = arith.constant 0 : index
    %11 = vector.load %arg4[%c0_8, %c0_9] : memref<64x128xf32, #tpu.memory_space<vmem>>, vector<64x128xf32>
    tpu.vector_store %arg4[%c0_8, %c0_9], %10 {strides = array<i32>} : memref<64x128xf32, #tpu.memory_space<vmem>>, vector<64x128xf32>,
    return
  }
  func.func @transform_0(%arg0: i32) -> (i32, i32) {
    %c0_i32 = arith.constant 0 : i32
    %c0_i32_0 = arith.constant 0 : i32
    return %arg0, %c0_i32 : i32, i32
  }
  func.func @transform_1(%arg0: i32) -> (i32, i32) {
    %c0_i32 = arith.constant 0 : i32
    %c0_i32_0 = arith.constant 0 : i32
    %c0_i32_1 = arith.constant 0 : i32
    return %c0_i32, %c0_i32_0 : i32, i32
  }
  func.func @transform_2(%arg0: i32) -> (i32, i32) {
    %c0_i32 = arith.constant 0 : i32
    %c0_i32_0 = arith.constant 0 : i32
    %c0_i32_1 = arith.constant 0 : i32
    return %c0_i32, %c0_i32_0 : i32, i32
  }
  func.func @transform_3(%arg0: i32) -> (i32, i32) {
    %c0_i32 = arith.constant 0 : i32
    %c0_i32_0 = arith.constant 0 : i32
    return %arg0, %c0_i32 : i32, i32
  }
}

</mosaic_0001>

<llo_original>
// kernel: tpu_custom_call.1
$region0: #{tpu_custom_call.1}
  #allocation0 [shape = 'u32[]', space=smem, size = 0x4, offset = 0x4, fixed_abs, tag = 'smem constant byte address 0x4 - core index']
  #allocation1 [shape = 'u32[144,128]{1,0:T(1,128)}', space=vmem, size = 0x12000, scoped, tag = 'internal scratch']
  %s0 = inlined_call_operand.vmem [shape: f32[64,32], index: 0, kind: input, shape index: {}]
  %s1 = inlined_call_operand.vmem [shape: f32[32,128], index: 1, kind: input, shape index: {}]
  %s2 = inlined_call_operand.hbm [shape: f32[128,128], index: 2, kind: input, shape index: {}]
  %s3 = inlined_call_operand.hbm [shape: f32[64,128], index: 3, kind: output, shape index: {}]
  %s4 = sld [smem:[#allocation0]]
  $region26: #{tpu_custom_call.1} parent=0
    _
  %s6 = ssub.s32 1, %s4
  %s7 = scalar_select 0, %s6, %s4
  $region1: #{tpu_custom_call.1} parent=0
    #allocation2 [shape = 'u8[65536]{0}', space=vmem, size = 0x10000, scoped, tag = 'input window, operand 2, single buffered']
    #allocation3 [shape = 's32[1]{0}', space=sflag, size = 0x4, scoped, tag = 'scoped memory for tpu_custom_call.1']
    #allocation4 [shape = 's32[1]{0}', space=sflag, size = 0x4, scoped, tag = 'scoped memory for tpu_custom_call.1']
    #allocation5 [shape = 'u8[32768]{0}', space=vmem, size = 0x8000, scoped, tag = 'output window, operand 0, single buffered']
    %8 = vsyncpa [#allocation3], 0
    %9 = vsyncpa [#allocation4], 0
    // Predicated region
    $region2: #{tpu_custom_call.1} parent=1 // pred_check
      _
    $region3: #{tpu_custom_call.1} parent=1 // pred_check_branch
      %11 = sbr.rel (0) target = $region5
    $region4: #{tpu_custom_call.1} parent=1 // pred_region
      _
    $region5: #{tpu_custom_call.1} parent=1 // pred_fallthru
      _
    // Predicated region
    $region6: #{tpu_custom_call.1} parent=1 // pred_check
      _
    $region7: #{tpu_custom_call.1} parent=1 // pred_check_branch
      %13 = sbr.rel (0) target = $region9
    $region8: #{tpu_custom_call.1} parent=1 // pred_region
      _
    $region9: #{tpu_custom_call.1} parent=1 // pred_fallthru
      _
    // Predicated region
    $region10: #{tpu_custom_call.1} parent=1 // pred_check
      _
    $region11: #{tpu_custom_call.1} parent=1 // pred_check_branch
      %15 = sbr.rel (0) target = $region13
    $region12: #{tpu_custom_call.1} parent=1 // pred_region
      %s17 = ssub.s32 2048, 2048
      %18 = vsyncadd [#allocation3], %s17
      %s19 = sshll.u32 [#allocation2], 4
      %s20 = int_to_ptr.vmem [resolvable:$true] %s19
      %25 = dma.hbm_to_vmem [thread:$0]  %s2, 2048, %s20, [#allocation3], 128, 128, 8
    $region13: #{tpu_custom_call.1} parent=1 // pred_fallthru
      _
    // Predicated region
    $region14: #{tpu_custom_call.1} parent=1 // pred_check
      _
    $region15: #{tpu_custom_call.1} parent=1 // pred_check_branch
      %27 = sbr.rel (0) target = $region17
    $region16: #{tpu_custom_call.1} parent=1 // pred_region
      %28 = dma.done [#allocation3], 2048
    $region17: #{tpu_custom_call.1} parent=1 // pred_fallthru
      _
    %v29 = vld [vmem:[%s1] sm:$0xff]
    %v30 = vld [vmem:[%s1 + $0x8] sm:$0xff]
    %v31 = vld [vmem:[%s1 + $0x10] sm:$0xff]
    %v32 = vld [vmem:[%s1 + $0x18] sm:$0xff]
    %v33 = vld [vmem:[#allocation2] sm:$0xff]
    %v34 = vld [vmem:[#allocation2 + $0x8] sm:$0xff]
    %v35 = vld [vmem:[#allocation2 + $0x10] sm:$0xff]
    %v36 = vld [vmem:[#allocation2 + $0x18] sm:$0xff]
    %v37 = vld [vmem:[#allocation2 + $0x20] sm:$0xff]
    %v38 = vld [vmem:[#allocation2 + $0x28] sm:$0xff]
    %v39 = vld [vmem:[#allocation2 + $0x30] sm:$0xff]
    %v40 = vld [vmem:[#allocation2 + $0x38] sm:$0xff]
    %v41 = vld [vmem:[#allocation2 + $0x40] sm:$0xff]
    %v42 = vld [vmem:[#allocation2 + $0x48] sm:$0xff]
    %v43 = vld [vmem:[#allocation2 + $0x50] sm:$0xff]
    %v44 = vld [vmem:[#allocation2 + $0x58] sm:$0xff]
    %v45 = vld [vmem:[#allocation2 + $0x60] sm:$0xff]
    %v46 = vld [vmem:[#allocation2 + $0x68] sm:$0xff]
    %v47 = vld [vmem:[#allocation2 + $0x70] sm:$0xff]
    %v48 = vld [vmem:[#allocation2 + $0x78] sm:$0xff]
    %v49 = vld [vmem:[%s0] sm:$0xff]
    %v50 = vld [vmem:[%s0 + $0x8] sm:$0xff]
    %v51 = vld [vmem:[%s0 + $0x10] sm:$0xff]
    %v52 = vld [vmem:[%s0 + $0x18] sm:$0xff]
    %v53 = vld [vmem:[%s0 + $0x20] sm:$0xff]
    %v54 = vld [vmem:[%s0 + $0x28] sm:$0xff]
    %v55 = vld [vmem:[%s0 + $0x30] sm:$0xff]
    %v56 = vld [vmem:[%s0 + $0x38] sm:$0xff]
    %vm57 = vcmask 261120
    %v59 = vsel %vm57, %v49, 0
    %v62 = vsel %vm57, %v50, 0
    %v65 = vsel %vm57, %v51, 0
    %v68 = vsel %vm57, %v52, 0
    %v71 = vsel %vm57, %v53, 0
    %v74 = vsel %vm57, %v54, 0
    %v77 = vsel %vm57, %v55, 0
    %v80 = vsel %vm57, %v56, 0
    %82 = vmatprep.subr.mxu0 0.0
    %83 = vmatpush1.msra.mxu0 %v29
    %84 = vmatprep.subr.mxu0 0.0
    %85 = vmatpush1.msra.mxu0 %v30
    %86 = vmatprep.subr.mxu0 0.0
    %87 = vmatpush1.msra.mxu0 %v31
    %88 = vmatprep.subr.mxu0 0.0
    %89 = vmatpush1.msra.mxu0 %v32
    %90 = vmatprep.subr.mxu0 0.0
    %91 = vmatpush1.msra.mxu0 0.0
    %92 = vmatprep.subr.mxu0 0.0
    %93 = vmatpush1.msra.mxu0 0.0
    %94 = vmatprep.subr.mxu0 0.0
    %95 = vmatpush1.msra.mxu0 0.0
    %96 = vmatprep.subr.mxu0 0.0
    %97 = vmatpush1.msra.mxu0 0.0
    %98 = vmatprep.subr.mxu0 0.0
    %99 = vmatpush1.msra.mxu0 0.0
    %100 = vmatprep.subr.mxu0 0.0
    %101 = vmatpush1.msra.mxu0 0.0
    %102 = vmatprep.subr.mxu0 0.0
    %103 = vmatpush1.msra.mxu0 0.0
    %104 = vmatprep.subr.mxu0 0.0
    %105 = vmatpush1.msra.mxu0 0.0
    %106 = vmatprep.subr.mxu0 0.0
    %107 = vmatpush1.msra.mxu0 0.0
    %108 = vmatprep.subr.mxu0 0.0
    %109 = vmatpush1.msra.mxu0 0.0
    %110 = vmatprep.subr.mxu0 0.0
    %111 = vmatpush1.msra.mxu0 0.0
    %112 = vmatprep.subr.mxu0 0.0
    %113 = vmatpush1.msra.mxu0 0.0
    %114 = vmatprep.subr.mxu0 0.0
    %115 = vmatpush1.msra.mxu0 0.0
    %116 = vmatprep.subr.mxu0 0.0
    %117 = vmatpush1.msra.mxu0 0.0
    %118 = vmatprep.subr.mxu0 0.0
    %119 = vmatpush1.msra.mxu0 0.0
    %120 = vmatprep.subr.mxu0 0.0
    %121 = vmatpush1.msra.mxu0 0.0
    %122 = vmatprep.subr.mxu0 0.0
    %123 = vmatpush1.msra.mxu0 0.0
    %124 = vmatprep.subr.mxu0 0.0
    %125 = vmatpush1.msra.mxu0 0.0
    %126 = vmatprep.subr.mxu0 0.0
    %127 = vmatpush1.msra.mxu0 0.0
    %128 = vmatprep.subr.mxu0 0.0
    %129 = vmatpush1.msra.mxu0 0.0
    %130 = vmatprep.subr.mxu0 0.0
    %131 = vmatpush1.msra.mxu0 0.0
    %132 = vmatprep.subr.mxu0 0.0
    %133 = vmatpush1.msra.mxu0 0.0
    %134 = vmatprep.subr.mxu0 0.0
    %135 = vmatpush1.msra.mxu0 0.0
    %136 = vmatprep.subr.mxu0 0.0
    %137 = vmatpush1.msra.mxu0 0.0
    %138 = vmatprep.subr.mxu0 0.0
    %139 = vmatpush1.msra.mxu0 0.0
    %140 = vmatprep.subr.mxu0 0.0
    %141 = vmatpush1.msra.mxu0 0.0
    %142 = vmatprep.subr.mxu0 0.0
    %143 = vmatpush1.msra.mxu0 0.0
    %144 = vmatprep.subr.mxu0 0.0
    %145 = vmatpush1.msra.mxu0 0.0
    %146 = vmatprep.mubr.f32.mxu0 0.0
    %147 = vmatmul.mubr.f32.gmra.mrb[0].mxu0 %v59
    %v148 = vpop.f32.mrb[0].mxu0
    %v149 = vadd.f32 0.0, %v148
    %v150 = vpop.f32.mrb[0].mxu0
    %151 = vmatprep.mubr.f32.mxu0 0.0
    %152 = vmatmul.mubr.f32.gmra.mrb[0].mxu0 %v62
    %v153 = vpop.f32.mrb[0].mxu0
    %v154 = vadd.f32 0.0, %v153
    %v155 = vpop.f32.mrb[0].mxu0
    %156 = vmatprep.mubr.f32.mxu0 0.0
    %157 = vmatmul.mubr.f32.gmra.mrb[0].mxu0 %v65
    %v158 = vpop.f32.mrb[0].mxu0
    %v159 = vadd.f32 0.0, %v158
    %v160 = vpop.f32.mrb[0].mxu0
    %161 = vmatprep.mubr.f32.mxu0 0.0
    %162 = vmatmul.mubr.f32.gmra.mrb[0].mxu0 %v68
    %v163 = vpop.f32.mrb[0].mxu0
    %v164 = vadd.f32 0.0, %v163
    %v165 = vpop.f32.mrb[0].mxu0
    %166 = vmatprep.mubr.f32.mxu0 0.0
    %167 = vmatmul.mubr.f32.gmra.mrb[0].mxu0 %v71
    %v168 = vpop.f32.mrb[0].mxu0
    %v169 = vadd.f32 0.0, %v168
    %v170 = vpop.f32.mrb[0].mxu0
    %171 = vmatprep.mubr.f32.mxu0 0.0
    %172 = vmatmul.mubr.f32.gmra.mrb[0].mxu0 %v74
    %v173 = vpop.f32.mrb[0].mxu0
    %v174 = vadd.f32 0.0, %v173
    %v175 = vpop.f32.mrb[0].mxu0
    %176 = vmatprep.mubr.f32.mxu0 0.0
    %177 = vmatmul.mubr.f32.gmra.mrb[0].mxu0 %v77
    %v178 = vpop.f32.mrb[0].mxu0
    %v179 = vadd.f32 0.0, %v178
    %v180 = vpop.f32.mrb[0].mxu0
    %181 = vmatprep.mubr.f32.mxu0 0.0
    %182 = vmatmul.mubr.f32.gmra.mrb[0].mxu0 %v80
    %v183 = vpop.f32.mrb[0].mxu0
    %v184 = vadd.f32 0.0, %v183
    %v185 = vpop.f32.mrb[0].mxu0
    %186 = vdwg.mxu0
    %v187 = vmul.f32 %v149, 0.2
    %v188 = vmul.f32 %v154, 0.2
    %v189 = vmul.f32 %v159, 0.2
    %v190 = vmul.f32 %v164, 0.2
    %v191 = vmul.f32 %v169, 0.2
    %v192 = vmul.f32 %v174, 0.2
    %v193 = vmul.f32 %v179, 0.2
    %v194 = vmul.f32 %v184, 0.2
    %v195 = vmax.f32 %v149, %v187
    %v196 = vmax.f32 %v154, %v188
    %v197 = vmax.f32 %v159, %v189
    %v198 = vmax.f32 %v164, %v190
    %v199 = vmax.f32 %v169, %v191
    %v200 = vmax.f32 %v174, %v192
    %v201 = vmax.f32 %v179, %v193
    %v202 = vmax.f32 %v184, %v194
    %203 = vmatprep.subr.mxu0 0.0
    %204 = vmatpush1.msra.mxu0 %v33
    %205 = vmatprep.subr.mxu0 0.0
    %206 = vmatpush1.msra.mxu0 %v34
    %207 = vmatprep.subr.mxu0 0.0
    %208 = vmatpush1.msra.mxu0 %v35
    %209 = vmatprep.subr.mxu0 0.0
    %210 = vmatpush1.msra.mxu0 %v36
    %211 = vmatprep.subr.mxu0 0.0
    %212 = vmatpush1.msra.mxu0 %v37
    %213 = vmatprep.subr.mxu0 0.0
    %214 = vmatpush1.msra.mxu0 %v38
    %215 = vmatprep.subr.mxu0 0.0
    %216 = vmatpush1.msra.mxu0 %v39
    %217 = vmatprep.subr.mxu0 0.0
    %218 = vmatpush1.msra.mxu0 %v40
    %219 = vmatprep.subr.mxu0 0.0
    %220 = vmatpush1.msra.mxu0 %v41
    %221 = vmatprep.subr.mxu0 0.0
    %222 = vmatpush1.msra.mxu0 %v42
    %223 = vmatprep.subr.mxu0 0.0
    %224 = vmatpush1.msra.mxu0 %v43
    %225 = vmatprep.subr.mxu0 0.0
    %226 = vmatpush1.msra.mxu0 %v44
    %227 = vmatprep.subr.mxu0 0.0
    %228 = vmatpush1.msra.mxu0 %v45
    %229 = vmatprep.subr.mxu0 0.0
    %230 = vmatpush1.msra.mxu0 %v46
    %231 = vmatprep.subr.mxu0 0.0
    %232 = vmatpush1.msra.mxu0 %v47
    %233 = vmatprep.subr.mxu0 0.0
    %234 = vmatpush1.msra.mxu0 %v48
    %235 = vmatprep.subr.mxu0 0.0
    %236 = vmatpush1.msra.mxu0 0.0
    %237 = vmatprep.subr.mxu0 0.0
    %238 = vmatpush1.msra.mxu0 0.0
    %239 = vmatprep.subr.mxu0 0.0
    %240 = vmatpush1.msra.mxu0 0.0
    %241 = vmatprep.subr.mxu0 0.0
    %242 = vmatpush1.msra.mxu0 0.0
    %243 = vmatprep.subr.mxu0 0.0
    %244 = vmatpush1.msra.mxu0 0.0
    %245 = vmatprep.subr.mxu0 0.0
    %246 = vmatpush1.msra.mxu0 0.0
    %247 = vmatprep.subr.mxu0 0.0
    %248 = vmatpush1.msra.mxu0 0.0
    %249 = vmatprep.subr.mxu0 0.0
    %250 = vmatpush1.msra.mxu0 0.0
    %251 = vmatprep.subr.mxu0 0.0
    %252 = vmatpush1.msra.mxu0 0.0
    %253 = vmatprep.subr.mxu0 0.0
    %254 = vmatpush1.msra.mxu0 0.0
    %255 = vmatprep.subr.mxu0 0.0
    %256 = vmatpush1.msra.mxu0 0.0
    %257 = vmatprep.subr.mxu0 0.0
    %258 = vmatpush1.msra.mxu0 0.0
    %259 = vmatprep.subr.mxu0 0.0
    %260 = vmatpush1.msra.mxu0 0.0
    %261 = vmatprep.subr.mxu0 0.0
    %262 = vmatpush1.msra.mxu0 0.0
    %263 = vmatprep.subr.mxu0 0.0
    %264 = vmatpush1.msra.mxu0 0.0
    %265 = vmatprep.subr.mxu0 0.0
    %266 = vmatpush1.msra.mxu0 0.0
    %267 = vmatprep.mubr.f32.mxu0 0.0
    %268 = vmatmul.mubr.f32.gmra.mrb[0].mxu0 %v195
    %v269 = vpop.f32.mrb[0].mxu0
    %v270 = vadd.f32 0.0, %v269
    %v271 = vpop.f32.mrb[0].mxu0
    %272 = vmatprep.mubr.f32.mxu0 0.0
    %273 = vmatmul.mubr.f32.gmra.mrb[0].mxu0 %v196
    %v274 = vpop.f32.mrb[0].mxu0
    %v275 = vadd.f32 0.0, %v274
    %v276 = vpop.f32.mrb[0].mxu0
    %277 = vmatprep.mubr.f32.mxu0 0.0
    %278 = vmatmul.mubr.f32.gmra.mrb[0].mxu0 %v197
    %v279 = vpop.f32.mrb[0].mxu0
    %v280 = vadd.f32 0.0, %v279
    %v281 = vpop.f32.mrb[0].mxu0
    %282 = vmatprep.mubr.f32.mxu0 0.0
    %283 = vmatmul.mubr.f32.gmra.mrb[0].mxu0 %v198
    %v284 = vpop.f32.mrb[0].mxu0
    %v285 = vadd.f32 0.0, %v284
    %v286 = vpop.f32.mrb[0].mxu0
    %287 = vmatprep.mubr.f32.mxu0 0.0
    %288 = vmatmul.mubr.f32.gmra.mrb[0].mxu0 %v199
    %v289 = vpop.f32.mrb[0].mxu0
    %v290 = vadd.f32 0.0, %v289
    %v291 = vpop.f32.mrb[0].mxu0
    %292 = vmatprep.mubr.f32.mxu0 0.0
    %293 = vmatmul.mubr.f32.gmra.mrb[0].mxu0 %v200
    %v294 = vpop.f32.mrb[0].mxu0
    %v295 = vadd.f32 0.0, %v294
    %v296 = vpop.f32.mrb[0].mxu0
    %297 = vmatprep.mubr.f32.mxu0 0.0
    %298 = vmatmul.mubr.f32.gmra.mrb[0].mxu0 %v201
    %v299 = vpop.f32.mrb[0].mxu0
    %v300 = vadd.f32 0.0, %v299
    %v301 = vpop.f32.mrb[0].mxu0
    %302 = vmatprep.mubr.f32.mxu0 0.0
    %303 = vmatmul.mubr.f32.gmra.mrb[0].mxu0 %v202
    %v304 = vpop.f32.mrb[0].mxu0
    %v305 = vadd.f32 0.0, %v304
    %v306 = vpop.f32.mrb[0].mxu0
    %307 = vdwg.mxu0
    %v308 = vmul.f32 %v270, 0.2
    %v309 = vmul.f32 %v275, 0.2
    %v310 = vmul.f32 %v280, 0.2
    %v311 = vmul.f32 %v285, 0.2
    %v312 = vmul.f32 %v290, 0.2
    %v313 = vmul.f32 %v295, 0.2
    %v314 = vmul.f32 %v300, 0.2
    %v315 = vmul.f32 %v305, 0.2
    %v316 = vmax.f32 %v270, %v308
    %v317 = vmax.f32 %v275, %v309
    %v318 = vmax.f32 %v280, %v310
    %v319 = vmax.f32 %v285, %v311
    %v320 = vmax.f32 %v290, %v312
    %v321 = vmax.f32 %v295, %v313
    %v322 = vmax.f32 %v300, %v314
    %v323 = vmax.f32 %v305, %v315
    %324 = vst [vmem:[#allocation5] sm:$0xff] %v316
    %325 = vst [vmem:[#allocation5 + $0x8] sm:$0xff] %v317
    %326 = vst [vmem:[#allocation5 + $0x10] sm:$0xff] %v318
    %327 = vst [vmem:[#allocation5 + $0x18] sm:$0xff] %v319
    %328 = vst [vmem:[#allocation5 + $0x20] sm:$0xff] %v320
    %329 = vst [vmem:[#allocation5 + $0x28] sm:$0xff] %v321
    %330 = vst [vmem:[#allocation5 + $0x30] sm:$0xff] %v322
    %331 = vst [vmem:[#allocation5 + $0x38] sm:$0xff] %v323
    // Predicated region
    $region18: #{tpu_custom_call.1} parent=1 // pred_check
      _
    $region19: #{tpu_custom_call.1} parent=1 // pred_check_branch
      %333 = sbr.rel (0) target = $region21
    $region20: #{tpu_custom_call.1} parent=1 // pred_region
      %s335 = ssub.s32 1024, 1024
      %336 = vsyncadd [#allocation4], %s335
      %s337 = sshll.u32 [#allocation5], 4
      %s338 = int_to_ptr.vmem [resolvable:$true] %s337
      %343 = dma.vmem_to_hbm [thread:$0]  %s338, 1024, %s3, [#allocation4], 128, 128, 8
    $region21: #{tpu_custom_call.1} parent=1 // pred_fallthru
      _
    // Predicated region
    $region22: #{tpu_custom_call.1} parent=1 // pred_check
      _
    $region23: #{tpu_custom_call.1} parent=1 // pred_check_branch
      %345 = sbr.rel (0) target = $region25
    $region24: #{tpu_custom_call.1} parent=1 // pred_region
      %346 = dma.done [#allocation4], 1024
    $region25: #{tpu_custom_call.1} parent=1 // pred_fallthru
      _
    %347 = vsyncpa [#allocation3], 1
    %348 = vsyncpa [#allocation4], 1

</llo_original>
